<compile_context>
chip_gen: v5e
topology: v5e:2x2
jax: 0.10.0
libtpu: 0.0.40
codegen_flags: <defaults>
</compile_context>

<pallas_src>
import functools

import jax
import jax.numpy as jnp
from jax.experimental import pallas as pl
from jax.experimental.pallas import tpu as pltpu


def _channel_attention_kernel(x_ref, w1_ref, b1_ref, w2_ref, b2_ref, o_ref,
                              *, hw, hw_pad):
    # One grid step = TB batch rows.
    # x_ref : (TB, C, HW_pad)   w1_ref: (C, Cr)   b1_ref: (1, Cr)
    # w2_ref: (Cr, C)           b2_ref: (1, C)    o_ref : (TB, C, HW_pad)
    x = x_ref[...]                                    # (TB, C, HW_pad)
    xf = x.astype(jnp.float32)
    tb = x.shape[0]
    inv_hw = 1.0 / float(hw)                          # constant reciprocal

    # AdaptiveAvgPool2d(1): padded lanes are zeros, so the sum is exact.
    avg = jnp.sum(xf, axis=-1) * inv_hw               # (TB, C)

    # AdaptiveMaxPool2d(1): exclude padded lanes from the max.
    if hw_pad != hw:
        lane = jax.lax.broadcasted_iota(jnp.int32, (1, 1, hw_pad), 2)
        xmax_in = jnp.where(lane < hw, xf, -jnp.inf)
    else:
        xmax_in = xf
    mx = jnp.max(xmax_in, axis=-1)                    # (TB, C)

    # Fused FC: both pooled matrices go through the MLP in one pair of matmuls.
    pooled = jnp.concatenate([avg, mx], axis=0)       # (2*TB, C)
    h = jnp.dot(pooled, w1_ref[...],
                preferred_element_type=jnp.float32) + b1_ref[...]
    h = jnp.maximum(h, 0.0)                           # ReLU
    y = jnp.dot(h, w2_ref[...],
                preferred_element_type=jnp.float32) + b2_ref[...]
    y = jax.nn.sigmoid(y)                             # Sigmoid at end of fc

    # forward(): torch.sigmoid(avg_out + max_out) -> intentional double sigmoid.
    scale = jax.nn.sigmoid(y[:tb, :] + y[tb:, :])     # (TB, C)

    o_ref[...] = (x * scale[:, :, None].astype(x.dtype)).astype(o_ref.dtype)


def channel_attention(x, w1, b1, w2, b2, *, target_block_bytes=1 << 20):
    """x: (B, C, H, W). Returns (B, C, H, W) = x * channel-attention scale."""
    B, C, H, W = x.shape
    HW = H * W
    itemsize = jnp.dtype(x.dtype).itemsize

    # Lane-dense spatial axis (multiple of 128) -> unmasked vector stores.
    HW_pad = max(128, ((HW + 127) // 128) * 128)
    row_bytes = C * HW_pad * itemsize

    # Batch tile: largest tile that keeps one block near ~1 MiB (capped at B).
    # For small (EEG-scale) batches this makes the grid a single step.
    TB = int(max(1, min(B, target_block_bytes // max(1, row_bytes))))
    B_pad = ((B + TB - 1) // TB) * TB
    num_steps = B_pad // TB

    x_flat = x.reshape(B, C, HW)
    if HW_pad != HW or B_pad != B:
        # Zero padding: exact for the sum; max pool masks padded lanes to -inf.
        # Padded batch rows produce garbage scale but 0 * scale = 0, stripped below.
        x_flat = jnp.pad(x_flat, ((0, B_pad - B), (0, 0), (0, HW_pad - HW)))

    b1_2d = b1.reshape(1, -1)
    b2_2d = b2.reshape(1, -1)
    Cr = w1.shape[1]

    kernel = functools.partial(_channel_attention_kernel, hw=HW, hw_pad=HW_pad)

    grid_spec = pl.GridSpec(
        grid=(num_steps,),
        in_specs=[
            pl.BlockSpec((TB, C, HW_pad), lambda b: (b, 0, 0)),   # pipelined x
            pl.BlockSpec(w1.shape, lambda b: (0, 0)),             # VMEM-resident
            pl.BlockSpec(b1_2d.shape, lambda b: (0, 0)),
            pl.BlockSpec(w2.shape, lambda b: (0, 0)),
            pl.BlockSpec(b2_2d.shape, lambda b: (0, 0)),
        ],
        out_specs=pl.BlockSpec((TB, C, HW_pad), lambda b: (b, 0, 0)),
    )

    cost = pl.CostEstimate(
        flops=2 * (2 * B) * C * Cr * 2 + 4 * B * C * HW,
        transcendentals=3 * B * C,                         # 2 fc sigmoids + final
        bytes_accessed=2 * B * C * HW * itemsize
        + (w1.size + b1.size + w2.size + b2.size) * 4,
    )

    out_flat = pl.pallas_call(
        kernel,
        out_shape=jax.ShapeDtypeStruct((B_pad, C, HW_pad), x.dtype),
        grid_spec=grid_spec,
        compiler_params=pltpu.CompilerParams(
            dimension_semantics=("parallel",)),             # no-op when num_steps == 1
        cost_estimate=cost,
    )(x_flat, w1, b1_2d, w2, b2_2d)

    return out_flat[:B, :, :HW].reshape(B, C, H, W)


def reference(x, w1, b1, w2, b2):
    """Pure-JAX reference matching the PyTorch forward."""
    avg = jnp.mean(x, axis=(2, 3))                   # (B, C)
    mx = jnp.max(x, axis=(2, 3))                     # (B, C)

    def fc(v):
        h = jnp.maximum(v @ w1 + b1, 0.0)
        return jax.nn.sigmoid(h @ w2 + b2)

    scale = jax.nn.sigmoid(fc(avg) + fc(mx))         # (B, C)
    return x * scale[:, :, None, None]


if __name__ == "__main__":
    # Small shapes consistent with the module: channels divisible by reduction=8.
    B, C, H, W = 2, 16, 16, 16
    reduction = 8
    Cr = C // reduction

    key = jax.random.PRNGKey(0)
    kx, k1, kb1, k2, kb2 = jax.random.split(key, 5)

    x = jax.random.normal(kx, (B, C, H, W), dtype=jnp.float32)
    # Deterministic parameter init (weights stored as (in, out)).
    w1 = jax.random.normal(k1, (C, Cr), dtype=jnp.float32) * 0.1
    b1 = jax.random.normal(kb1, (Cr,), dtype=jnp.float32) * 0.1
    w2 = jax.random.normal(k2, (Cr, C), dtype=jnp.float32) * 0.1
    b2 = jax.random.normal(kb2, (C,), dtype=jnp.float32) * 0.1

    out = channel_attention(x, w1, b1, w2, b2)
    out = jax.block_until_ready(out)

    ref = reference(x, w1, b1, w2, b2)
    assert out.shape == (B, C, H, W)
    assert jnp.allclose(out, ref, atol=1e-5, rtol=1e-5), "mismatch vs reference"

    print("KERNEL_OK")
</pallas_src>

<mosaic_0001>
module attributes {stable_mosaic.version = 11 : i64} {
  func.func @_channel_attention_kernel(%arg0: i32, %arg1: memref<2x16x256xf32, #tpu.memory_space<vmem>>, %arg2: memref<16x2xf32, #tpu.memory_space<vmem>>, %arg3: memref<1x2xf32, #tpu.memory_space<vmem>>, %arg4: memref<2x16xf32, #tpu.memory_space<vmem>>, %arg5: memref<1x16xf32, #tpu.memory_space<vmem>>, %arg6: memref<2x16x256xf32, #tpu.memory_space<vmem>>) attributes {dimension_semantics = [#tpu.dimension_semantics<parallel>], iteration_bounds = array<i64: 1>, scalar_prefetch = 0 : i64, scratch_operands = 0 : i64, tpu.core_type = #tpu.core_type<tc>, window_params = [{transform_indices = @transform_0, window_bounds = array<i64: 2, 16, 256>}, {pipeline_mode = #tpu.pipeline_mode<synchronous>, transform_indices = @transform_1, window_bounds = array<i64: 16, 2>}, {pipeline_mode = #tpu.pipeline_mode<synchronous>, transform_indices = @transform_2, window_bounds = array<i64: 1, 2>}, {pipeline_mode = #tpu.pipeline_mode<synchronous>, transform_indices = @transform_3, window_bounds = array<i64: 2, 16>}, {pipeline_mode = #tpu.pipeline_mode<synchronous>, transform_indices = @transform_4, window_bounds = array<i64: 1, 16>}, {transform_indices = @transform_5, window_bounds = array<i64: 2, 16, 256>}]} {
    %c0 = arith.constant 0 : index
    %c0_0 = arith.constant 0 : index
    %c0_1 = arith.constant 0 : index
    %0 = vector.load %arg1[%c0, %c0_0, %c0_1] : memref<2x16x256xf32, #tpu.memory_space<vmem>>, vector<2x16x256xf32>
    %cst = arith.constant dense<0.000000e+00> : vector<2x16xf32>
    %1 = vector.multi_reduction <add>, %0, %cst [2] : vector<2x16x256xf32> to vector<2x16xf32>
    %cst_2 = arith.constant 3.906250e-03 : f32
    %2 = vector.broadcast %cst_2 : f32 to vector<2x16xf32>
    %3 = arith.mulf %1, %2 : vector<2x16xf32>
    %cst_3 = arith.constant dense<0xFF800000> : vector<2x16xf32>
    %4 = vector.multi_reduction <maximumf>, %0, %cst_3 [2] : vector<2x16x256xf32> to vector<2x16xf32>
    %5 = tpu.concatenate %3, %4 in 0 : vector<2x16xf32>, vector<2x16xf32> -> vector<4x16xf32>
    %c0_4 = arith.constant 0 : index
    %c0_5 = arith.constant 0 : index
    %6 = vector.load %arg2[%c0_4, %c0_5] : memref<16x2xf32, #tpu.memory_space<vmem>>, vector<16x2xf32>
    %cst_6 = arith.constant dense<0.000000e+00> : vector<4x2xf32>
    %7 = tpu.matmul %5, %6, %cst_6 {dimension_numbers = #tpu.dot_dimension_numbers<[1], [0], [0], [1], [0, 0, 1, 1], [], []>} : vector<4x16xf32>, vector<16x2xf32>, vector<4x2xf32> -> vector<4x2xf32>
    %c0_7 = arith.constant 0 : index
    %c0_8 = arith.constant 0 : index
    %8 = vector.load %arg3[%c0_7, %c0_8] : memref<1x2xf32, #tpu.memory_space<vmem>>, vector<1x2xf32>
    %9 = vector.broadcast %8 : vector<1x2xf32> to vector<4x2xf32>
    %10 = arith.addf %7, %9 : vector<4x2xf32>
    %cst_9 = arith.constant 0.000000e+00 : f32
    %11 = vector.broadcast %cst_9 : f32 to vector<4x2xf32>
    %12 = arith.maximumf %10, %11 : vector<4x2xf32>
    %c0_10 = arith.constant 0 : index
    %c0_11 = arith.constant 0 : index
    %13 = vector.load %arg4[%c0_10, %c0_11] : memref<2x16xf32, #tpu.memory_space<vmem>>, vector<2x16xf32>
    %cst_12 = arith.constant dense<0.000000e+00> : vector<4x16xf32>
    %14 = tpu.matmul %12, %13, %cst_12 {dimension_numbers = #tpu.dot_dimension_numbers<[1], [0], [0], [1], [0, 0, 1, 1], [], []>} : vector<4x2xf32>, vector<2x16xf32>, vector<4x16xf32> -> vector<4x16xf32>
    %c0_13 = arith.constant 0 : index
    %c0_14 = arith.constant 0 : index
    %15 = vector.load %arg5[%c0_13, %c0_14] : memref<1x16xf32, #tpu.memory_space<vmem>>, vector<1x16xf32>
    %16 = vector.broadcast %15 : vector<1x16xf32> to vector<4x16xf32>
    %17 = arith.addf %14, %16 : vector<4x16xf32>
    %18 = arith.negf %17 : vector<4x16xf32>
    %19 = math.exp %18 : vector<4x16xf32>
    %cst_15 = arith.constant 1.000000e+00 : f32
    %20 = vector.broadcast %cst_15 : f32 to vector<4x16xf32>
    %21 = arith.addf %20, %19 : vector<4x16xf32>
    %22 = arith.divf %20, %21 : vector<4x16xf32>
    %23 = vector.extract_strided_slice %22 {offsets = [0, 0], sizes = [2, 16], strides = [1, 1]} : vector<4x16xf32> to vector<2x16xf32>
    %24 = vector.extract_strided_slice %22 {offsets = [2, 0], sizes = [2, 16], strides = [1, 1]} : vector<4x16xf32> to vector<2x16xf32>
    %25 = arith.addf %23, %24 : vector<2x16xf32>
    %26 = arith.negf %25 : vector<2x16xf32>
    %27 = math.exp %26 : vector<2x16xf32>
    %cst_16 = arith.constant 1.000000e+00 : f32
    %28 = vector.broadcast %cst_16 : f32 to vector<2x16xf32>
    %29 = arith.addf %28, %27 : vector<2x16xf32>
    %30 = arith.divf %28, %29 : vector<2x16xf32>
    %31 = vector.shape_cast %30 : vector<2x16xf32> to vector<2x16x1xf32>
    %32 = vector.broadcast %31 : vector<2x16x1xf32> to vector<2x16x256xf32>
    %33 = arith.mulf %0, %32 : vector<2x16x256xf32>
    %c0_17 = arith.constant 0 : index
    %c0_18 = arith.constant 0 : index
    %c0_19 = arith.constant 0 : index
    %34 = vector.load %arg6[%c0_17, %c0_18, %c0_19] : memref<2x16x256xf32, #tpu.memory_space<vmem>>, vector<2x16x256xf32>
    tpu.vector_store %arg6[%c0_17, %c0_18, %c0_19], %33 {strides = array<i32>} : memref<2x16x256xf32, #tpu.memory_space<vmem>>, vector<2x16x256xf32>,
    return
  }
  func.func @transform_0(%arg0: i32) -> (i32, i32, i32) {
    %c0_i32 = arith.constant 0 : i32
    %c0_i32_0 = arith.constant 0 : i32
    %c0_i32_1 = arith.constant 0 : i32
    return %arg0, %c0_i32, %c0_i32_0 : i32, i32, i32
  }
  func.func @transform_1(%arg0: i32) -> (i32, i32) {
    %c0_i32 = arith.constant 0 : i32
    %c0_i32_0 = arith.constant 0 : i32
    %c0_i32_1 = arith.constant 0 : i32
    return %c0_i32, %c0_i32_0 : i32, i32
  }
  func.func @transform_2(%arg0: i32) -> (i32, i32) {
    %c0_i32 = arith.constant 0 : i32
    %c0_i32_0 = arith.constant 0 : i32
    %c0_i32_1 = arith.constant 0 : i32
    return %c0_i32, %c0_i32_0 : i32, i32
  }
  func.func @transform_3(%arg0: i32) -> (i32, i32) {
    %c0_i32 = arith.constant 0 : i32
    %c0_i32_0 = arith.constant 0 : i32
    %c0_i32_1 = arith.constant 0 : i32
    return %c0_i32, %c0_i32_0 : i32, i32
  }
  func.func @transform_4(%arg0: i32) -> (i32, i32) {
    %c0_i32 = arith.constant 0 : i32
    %c0_i32_0 = arith.constant 0 : i32
    %c0_i32_1 = arith.constant 0 : i32
    return %c0_i32, %c0_i32_0 : i32, i32
  }
  func.func @transform_5(%arg0: i32) -> (i32, i32, i32) {
    %c0_i32 = arith.constant 0 : i32
    %c0_i32_0 = arith.constant 0 : i32
    %c0_i32_1 = arith.constant 0 : i32
    return %arg0, %c0_i32, %c0_i32_0 : i32, i32, i32
  }
}

</mosaic_0001>

<llo_original>
// kernel: tpu_custom_call.1
$region0: #{tpu_custom_call.1}
  #allocation0 [shape = 'u32[]', space=smem, size = 0x4, offset = 0x4, fixed_abs, tag = 'smem constant byte address 0x4 - core index']
  #allocation1 [shape = 'u32[72,128]{1,0:T(1,128)}', space=vmem, size = 0x9000, scoped, tag = 'internal scratch']
  %s0 = inlined_call_operand.hbm [shape: f32[2,16,256], index: 0, kind: input, shape index: {}]
  %s1 = inlined_call_operand.vmem [shape: f32[16,2], index: 1, kind: input, shape index: {}]
  %s2 = inlined_call_operand.vmem [shape: f32[1,2], index: 2, kind: input, shape index: {}]
  %s3 = inlined_call_operand.vmem [shape: f32[2,16], index: 3, kind: input, shape index: {}]
  %s4 = inlined_call_operand.vmem [shape: f32[1,16], index: 4, kind: input, shape index: {}]
  %s5 = inlined_call_operand.hbm [shape: f32[2,16,256], index: 5, kind: output, shape index: {}]
  %s6 = sld [smem:[#allocation0]]
  $region34: #{tpu_custom_call.1} parent=0
    _
  %s8 = ssub.s32 1, %s6
  %s9 = scalar_select 0, %s8, %s6
  $region1: #{tpu_custom_call.1} parent=0
    #allocation2 [shape = 'u8[32768]{0}', space=vmem, size = 0x8000, scoped, tag = 'input window, operand 0, single buffered']
    #allocation3 [shape = 's32[1]{0}', space=sflag, size = 0x4, scoped, tag = 'scoped memory for tpu_custom_call.1']
    #allocation4 [shape = 's32[1]{0}', space=sflag, size = 0x4, scoped, tag = 'scoped memory for tpu_custom_call.1']
    #allocation5 [shape = 'u8[32768]{0}', space=vmem, size = 0x8000, scoped, tag = 'output window, operand 0, single buffered']
    %10 = vsyncpa [#allocation3], 0
    %11 = vsyncpa [#allocation4], 0
    // Predicated region
    $region2: #{tpu_custom_call.1} parent=1 // pred_check
      _
    $region3: #{tpu_custom_call.1} parent=1 // pred_check_branch
      %13 = sbr.rel (0) target = $region5
    $region4: #{tpu_custom_call.1} parent=1 // pred_region
      %15 = vsyncadd [#allocation3], 0
      %s16 = sshll.u32 %s0, 4
      %s17 = int_to_ptr.hbm [resolvable:$true] %s16
      %s18 = sshll.u32 [#allocation2], 4
      %s19 = int_to_ptr.vmem [resolvable:$true] %s18
      %24 = dma.hbm_to_vmem [thread:$0]  %s17, 1024, %s19, [#allocation3], 256, 256, 16
    $region5: #{tpu_custom_call.1} parent=1 // pred_fallthru
      _
    // Predicated region
    $region6: #{tpu_custom_call.1} parent=1 // pred_check
      _
    $region7: #{tpu_custom_call.1} parent=1 // pred_check_branch
      %26 = sbr.rel (0) target = $region9
    $region8: #{tpu_custom_call.1} parent=1 // pred_region
      _
    $region9: #{tpu_custom_call.1} parent=1 // pred_fallthru
      _
    // Predicated region
    $region10: #{tpu_custom_call.1} parent=1 // pred_check
      _
    $region11: #{tpu_custom_call.1} parent=1 // pred_check_branch
      %28 = sbr.rel (0) target = $region13
    $region12: #{tpu_custom_call.1} parent=1 // pred_region
      _
    $region13: #{tpu_custom_call.1} parent=1 // pred_fallthru
      _
    // Predicated region
    $region14: #{tpu_custom_call.1} parent=1 // pred_check
      _
    $region15: #{tpu_custom_call.1} parent=1 // pred_check_branch
      %30 = sbr.rel (0) target = $region17
    $region16: #{tpu_custom_call.1} parent=1 // pred_region
      _
    $region17: #{tpu_custom_call.1} parent=1 // pred_fallthru
      _
    // Predicated region
    $region18: #{tpu_custom_call.1} parent=1 // pred_check
      _
    $region19: #{tpu_custom_call.1} parent=1 // pred_check_branch
      %32 = sbr.rel (0) target = $region21
    $region20: #{tpu_custom_call.1} parent=1 // pred_region
      _
    $region21: #{tpu_custom_call.1} parent=1 // pred_fallthru
      _
    // Predicated region
    $region22: #{tpu_custom_call.1} parent=1 // pred_check
      _
    $region23: #{tpu_custom_call.1} parent=1 // pred_check_branch
      %34 = sbr.rel (0) target = $region25
    $region24: #{tpu_custom_call.1} parent=1 // pred_region
      %36 = dma.done [#allocation3], 1024
    $region25: #{tpu_custom_call.1} parent=1 // pred_fallthru
      _
    %v37 = vld [vmem:[#allocation2] sm:$0xff]
    %v38 = vld [vmem:[#allocation2 + $0x8] sm:$0xff]
    %v39 = vld [vmem:[#allocation2 + $0x10] sm:$0xff]
    %v40 = vld [vmem:[#allocation2 + $0x18] sm:$0xff]
    %v41 = vld [vmem:[#allocation2 + $0x20] sm:$0xff]
    %v42 = vld [vmem:[#allocation2 + $0x28] sm:$0xff]
    %v43 = vld [vmem:[#allocation2 + $0x30] sm:$0xff]
    %v44 = vld [vmem:[#allocation2 + $0x38] sm:$0xff]
    %v45 = vadd.f32 %v37, %v38
    %46 = vadd.xlane.f32.xlu0 %v45
    %v47 = vpop.xlane.xlu0 %46
    %v48 = vadd.f32 %v39, %v40
    %49 = vadd.xlane.f32.xlu0 %v48
    %v50 = vpop.xlane.xlu0 %49
    %v51 = vadd.f32 %v41, %v42
    %52 = vadd.xlane.f32.xlu0 %v51
    %v53 = vpop.xlane.xlu0 %52
    %v54 = vadd.f32 %v43, %v44
    %55 = vadd.xlane.f32.xlu0 %v54
    %v56 = vpop.xlane.xlu0 %55
    %v57 = vmul.f32 %v47, 0.00390625
    %v58 = vmul.f32 %v50, 0.00390625
    %v59 = vmul.f32 %v53, 0.00390625
    %v60 = vmul.f32 %v56, 0.00390625
    %v61 = vmax.f32 %v37, %v38
    %62 = vmax.xlane.f32.xlu0 %v61
    %v63 = vpop.xlane.xlu0 %62
    %v64 = vmax.f32 %v39, %v40
    %65 = vmax.xlane.f32.xlu0 %v64
    %v66 = vpop.xlane.xlu0 %65
    %v67 = vmax.f32 %v41, %v42
    %68 = vmax.xlane.f32.xlu0 %v67
    %v69 = vpop.xlane.xlu0 %68
    %v70 = vmax.f32 %v43, %v44
    %71 = vmax.xlane.f32.xlu0 %v70
    %v72 = vpop.xlane.xlu0 %71
    %v77 = vlaneseq
    %v78 = vand.u32 %v77, 127
    %v79 = vperm.slane %v57, %v78
    %v80 = vadd.s32 %v78, 4294967288
    %v81 = vperm.slane %v58, %v80
    %vm82 = vcmask 130112
    %v83 = vsel %vm82, %v81, %v79
    %v84 = vperm.slane %v59, %v78
    %v85 = vperm.slane %v60, %v80
    %v86 = vsel %vm82, %v85, %v84
    %vm87 = vcmask 1041409
    %v88 = vsel %vm87, %v86, %v83
    %v94 = vperm.slane %v63, %v78
    %v95 = vperm.slane %v66, %v80
    %v96 = vsel %vm82, %v95, %v94
    %v97 = vperm.slane %v69, %v78
    %v98 = vperm.slane %v72, %v80
    %v99 = vsel %vm82, %v98, %v97
    %vm100 = vcmask 1043459
    %v101 = vsel %vm100, %v99, %v96
    %vm103 = vcmask 1041408
    %v104 = vsel %vm103, %v88, %v101
    %v105 = vld [vmem:[%s1] sm:$0xff]
    %v106 = vld [vmem:[%s1 + $0x8] sm:$0xff]
    %v107 = vld [vmem:[%s2] sm:$0x1]
    %v109 = vperm.slane %v107, 0
    %vm111 = vcmask 130048
    %v113 = vsel %vm111, %v104, 0
    %115 = vmatpush.msra.mxu0 0.0
    %116 = vmatpush.msra.mxu0 0.0
    %117 = vmatpush.msra.mxu0 0.0
    %118 = vmatpush.msra.mxu0 0.0
    %119 = vmatpush.msra.mxu0 0.0
    %120 = vmatpush.msra.mxu0 0.0
    %121 = vmatpush.msra.mxu0 0.0
    %122 = vmatpush.msra.mxu0 0.0
    %123 = vmatpush.msra.mxu0 0.0
    %124 = vmatpush.msra.mxu0 0.0
    %125 = vmatpush.msra.mxu0 0.0
    %126 = vmatpush.msra.mxu0 0.0
    %127 = vmatpush.msra.mxu0 0.0
    %128 = vmatpush.msra.mxu0 0.0
    %129 = vmatpush.msra.mxu0 %v106
    %130 = vmatpush.msra.mxu0 %v105
    %131 = vmatmul.f32.gmra.mxu0 %v113
    %v132 = vpop.f32.mrf.mxu0
    %v133 = vadd.f32 %v109, %v132
    %134 = vdwg.mxu0
    %v135 = vmax.f32 %v133, 0.0
    %v136 = vld [vmem:[%s3] sm:$0x3]
    %v137 = vld [vmem:[%s4] sm:$0x1]
    %v139 = vperm.slane %v137, 0
    %vm141 = vcmask 15360
    %v143 = vsel %vm141, %v135, 0
    %v146 = vsel %vm103, %v136, 0
    %148 = vmatpush.msra.mxu0 0.0
    %149 = vmatpush.msra.mxu0 0.0
    %150 = vmatpush.msra.mxu0 0.0
    %151 = vmatpush.msra.mxu0 0.0
    %152 = vmatpush.msra.mxu0 0.0
    %153 = vmatpush.msra.mxu0 0.0
    %154 = vmatpush.msra.mxu0 0.0
    %155 = vmatpush.msra.mxu0 0.0
    %156 = vmatpush.msra.mxu0 0.0
    %157 = vmatpush.msra.mxu0 0.0
    %158 = vmatpush.msra.mxu0 0.0
    %159 = vmatpush.msra.mxu0 0.0
    %160 = vmatpush.msra.mxu0 0.0
    %161 = vmatpush.msra.mxu0 0.0
    %162 = vmatpush.msra.mxu0 0.0
    %163 = vmatpush.msra.mxu0 %v146
    %164 = vmatmul.f32.gmra.mxu0 %v143
    %v165 = vpop.f32.mrf.mxu0
    %v166 = vadd.f32 %v139, %v165
    %167 = vdwg.mxu0
    %v168 = vxor.u32 %v166, 2147483648
    %v169 = vmul.f32 %v168, 1.442695
    %v170 = vpow.pop %v169
    %v171 = vadd.f32 %v170, 1.0
    %v172 = vrcp.pop %v171
    %v173 = vmul.f32 %v171, %v172
    %v174 = vsub.f32 1.0, %v173
    %v175 = vmul.f32 %v172, %v174
    %v176 = vadd.f32 %v172, %v175
    %vm177 = vweird.f32 %v171
    %vm178 = vweird.f32 %v172
    %vm179 = vmor %vm177, %vm178
    %v180 = vsel %vm179, %v172, %v176
    %v181 = vand.u32 2147483647, %v171
    %vm182 = vcmp.eq.f32.partialorder %v181, 8.507059e+37
    %v183 = vand.u32 %v171, 2147483648
    %v184 = vor.u32 1.1754944e-38, %v183
    %v185 = vsel %vm182, %v184, %v180
    %v186 = vmul.f32 1.0, %v185
    %v188 = vrot.slane %v186, 2
    %v190 = vadd.f32 %v186, %v188
    %v191 = vxor.u32 %v190, 2147483648
    %v192 = vmul.f32 %v191, 1.442695
    %v193 = vpow.pop %v192
    %v194 = vadd.f32 %v193, 1.0
    %v195 = vrcp.pop %v194
    %v196 = vmul.f32 %v194, %v195
    %v197 = vsub.f32 1.0, %v196
    %v198 = vmul.f32 %v195, %v197
    %v199 = vadd.f32 %v195, %v198
    %vm200 = vweird.f32 %v194
    %vm201 = vweird.f32 %v195
    %vm202 = vmor %vm200, %vm201
    %v203 = vsel %vm202, %v195, %v199
    %v204 = vand.u32 2147483647, %v194
    %vm205 = vcmp.eq.f32.partialorder %v204, 8.507059e+37
    %v206 = vand.u32 %v194, 2147483648
    %v207 = vor.u32 1.1754944e-38, %v206
    %v208 = vsel %vm205, %v207, %v203
    %v209 = vmul.f32 1.0, %v208
    %v210 = vperm.slane %v209, 0
    %v211 = vlaneseq
    %v212 = vshrl.u32 %v211, 7
    %214 = vset.pattern.permute.xlu0 %v212
    %215 = vperm.xlu0 %214, %v210
    %v216 = vpop.permute.xlu0 %215
    %v217 = vlaneseq
    %v218 = vshrl.u32 %v217, 7
    %v219 = vadd.s32 %v218, 8
    %220 = vset.pattern.permute.xlu0 %v219
    %221 = vperm.xlu0 %220, %v210
    %v222 = vpop.permute.xlu0 %221
    %v223 = vperm.slane %v209, 1
    %v224 = vlaneseq
    %v225 = vshrl.u32 %v224, 7
    %227 = vset.pattern.permute.xlu0 %v225
    %228 = vperm.xlu0 %227, %v223
    %v229 = vpop.permute.xlu0 %228
    %v230 = vlaneseq
    %v231 = vshrl.u32 %v230, 7
    %v232 = vadd.s32 %v231, 8
    %233 = vset.pattern.permute.xlu0 %v232
    %234 = vperm.xlu0 %233, %v223
    %v235 = vpop.permute.xlu0 %234
    %v236 = vmul.f32 %v37, %v216
    %v237 = vmul.f32 %v38, %v216
    %v238 = vmul.f32 %v39, %v222
    %v239 = vmul.f32 %v40, %v222
    %v240 = vmul.f32 %v41, %v229
    %v241 = vmul.f32 %v42, %v229
    %v242 = vmul.f32 %v43, %v235
    %v243 = vmul.f32 %v44, %v235
    %244 = vst [vmem:[#allocation5] sm:$0xff] %v236
    %245 = vst [vmem:[#allocation5 + $0x8] sm:$0xff] %v237
    %246 = vst [vmem:[#allocation5 + $0x10] sm:$0xff] %v238
    %247 = vst [vmem:[#allocation5 + $0x18] sm:$0xff] %v239
    %248 = vst [vmem:[#allocation5 + $0x20] sm:$0xff] %v240
    %249 = vst [vmem:[#allocation5 + $0x28] sm:$0xff] %v241
    %250 = vst [vmem:[#allocation5 + $0x30] sm:$0xff] %v242
    %251 = vst [vmem:[#allocation5 + $0x38] sm:$0xff] %v243
    // Predicated region
    $region26: #{tpu_custom_call.1} parent=1 // pred_check
      _
    $region27: #{tpu_custom_call.1} parent=1 // pred_check_branch
      %253 = sbr.rel (0) target = $region29
    $region28: #{tpu_custom_call.1} parent=1 // pred_region
      %255 = vsyncadd [#allocation4], 0
      %s256 = sshll.u32 [#allocation5], 4
      %s257 = int_to_ptr.vmem [resolvable:$true] %s256
      %s258 = sshll.u32 %s5, 4
      %s259 = int_to_ptr.hbm [resolvable:$true] %s258
      %264 = dma.vmem_to_hbm [thread:$0]  %s257, 1024, %s259, [#allocation4], 256, 256, 16
    $region29: #{tpu_custom_call.1} parent=1 // pred_fallthru
      _
    // Predicated region
    $region30: #{tpu_custom_call.1} parent=1 // pred_check
      _
    $region31: #{tpu_custom_call.1} parent=1 // pred_check_branch
      %266 = sbr.rel (0) target = $region33
    $region32: #{tpu_custom_call.1} parent=1 // pred_region
      %268 = dma.done [#allocation4], 1024
    $region33: #{tpu_custom_call.1} parent=1 // pred_fallthru
      _
    %269 = vsyncpa [#allocation3], 1
    %270 = vsyncpa [#allocation4], 1

</llo_original>
